<compile_context>
chip_gen: v7x
topology: tpu7x:2x2x1
jax: 0.10.0
libtpu: 0.0.40
codegen_flags: <defaults>
</compile_context>

<pallas_src>
import functools

import numpy as np
import jax
import jax.numpy as jnp
from jax import lax
from jax.experimental import pallas as pl
from jax.experimental.pallas import tpu as pltpu


def _make_kernel(W, L, stride):
    """Kernel over refs (channels on sublanes, flattened (batch, H*W) on lanes):
       x:(Cin, L)  w1:(Cmid, Cin)  b1:(Cmid, 1)  wd:(Cmid, 9)  masks:(4, L)
       w3:(Cout, Cmid)  b3:(Cout, 1)  [sel:(L, Lo)]  out:(Cout, Lo)."""

    def kernel(*refs):
        if stride > 1:
            (x_ref, w1_ref, b1_ref, wd_ref, m_ref,
             w3_ref, b3_ref, sel_ref, o_ref) = refs
        else:
            (x_ref, w1_ref, b1_ref, wd_ref, m_ref,
             w3_ref, b3_ref, o_ref) = refs
            sel_ref = None

        # ---- 1x1 conv (BN scale folded into weights) + shift + ReLU (MXU, f32 acc) ----
        y = jnp.dot(w1_ref[...], x_ref[...], preferred_element_type=jnp.float32)
        y = jnp.maximum(y + b1_ref[...], 0.0)               # (Cmid, L) f32

        # ---- depthwise 3x3, padding=1 (BN scale folded; BN shift folded into b3) ----
        m = m_ref[...]                                       # (4, L) {0,1} masks
        wd = wd_ref[...]                                     # (Cmid, 9) f32

        # W taps via XLU lane rolls + interior-column masks (reused across the 3 dh).
        # roll(y, s)[:, p] == y[:, p - s]  (jnp.roll semantics); wrapped lanes are masked.
        t_m = pltpu.roll(y, 1, axis=1) * m[0:1, :]           # y[:, p-1], valid w >= 1
        t_p = pltpu.roll(y, L - 1, axis=1) * m[1:2, :]       # y[:, p+1], valid w <= W-2

        acc = None
        for i in range(3):                                   # dh = i - 1
            row = (t_m * wd[:, 3 * i + 0:3 * i + 1]
                   + y * wd[:, 3 * i + 1:3 * i + 2]
                   + t_p * wd[:, 3 * i + 2:3 * i + 3])
            if i == 0:     # dh = -1: row[:, p-W], valid h >= 1
                contrib = pltpu.roll(row, W, axis=1) * m[2:3, :]
            elif i == 2:   # dh = +1: row[:, p+W], valid h <= H-2
                contrib = pltpu.roll(row, L - W, axis=1) * m[3:4, :]
            else:          # dh = 0
                contrib = row
            acc = contrib if acc is None else acc + contrib  # (Cmid, L) f32

        # ---- stride > 1: pick strided output lanes via one-hot matmul (MXU idle) ----
        if sel_ref is not None:
            y2 = jnp.dot(acc.astype(sel_ref.dtype), sel_ref[...],
                         preferred_element_type=jnp.float32)
        else:
            y2 = acc

        # ---- 1x1 conv (BN scale folded) + folded shift + ReLU; lane-dense store ----
        z = jnp.dot(w3_ref[...], y2.astype(w3_ref.dtype),
                    preferred_element_type=jnp.float32)
        o_ref[...] = jnp.maximum(z + b3_ref[...], 0.0)       # (Cout, Lo)

    return kernel


def prepare_bottleneck(params, N, H, W, stride, matmul_dtype=jnp.bfloat16):
    """One-time prep (call outside the hot path): fold BN into the conv weights, fold the
    depthwise BN shift through the last 1x1 conv, build the boundary masks and (stride>1)
    the one-hot selection matrix, and lay weights out for the channels-on-rows kernel."""
    w1, s1, b1, wd, s2, b2, w3, s3, b3 = params
    Cin, Cmid = w1.shape
    Cout = w3.shape[1]
    f32 = jnp.float32

    # Fold BN scales into conv weights (exact; kernel only adds per-channel shifts).
    w1f = w1 * s1                                   # (Cin, Cmid)
    wdf = wd * s2.reshape(1, 1, -1)                 # (3, 3, Cmid)
    w3f = w3 * s3                                   # (Cmid, Cout)

    w1_t = jnp.transpose(w1f).astype(matmul_dtype)          # (Cmid, Cin)
    w3_t = jnp.transpose(w3f).astype(matmul_dtype)          # (Cout, Cmid)
    wd_r = jnp.transpose(wdf.reshape(9, Cmid)).astype(f32)  # (Cmid, 9), stays f32

    b1_c = b1.reshape(-1, 1).astype(f32)                     # (Cmid, 1)
    # Fold depthwise BN shift b2 through the last 1x1 conv:
    #   w3f.T @ (acc + b2) + b3 == w3f.T @ acc + (w3f.T @ b2 + b3)
    # Valid for stride>1 too because every sel column is strictly one-hot.
    b3_c = (jnp.transpose(w3f) @ b2.reshape(-1, 1) + b3.reshape(-1, 1)).astype(f32)

    # Interior-validity masks on the flattened (n, h, w) lane axis.  Images occupy
    # contiguous H*W lane blocks, so these also zero cross-image roll wrap-around.
    L = N * H * W
    idx = np.arange(L)
    w_idx = idx % W
    h_idx = (idx // W) % H
    masks = jnp.asarray(np.stack([w_idx >= 1, w_idx <= W - 2,
                                  h_idx >= 1, h_idx <= H - 2]).astype(np.float32))

    sel = None
    if stride > 1:
        Ho = (H - 1) // stride + 1
        Wo = (W - 1) // stride + 1
        # TODO(synk): dense one-hot gather-as-matmul; replace with a strided relayout
        # for real spatial sizes (it does not scale past toy H*W).
        s_np = np.zeros((L, N * Ho * Wo), np.float32)
        for n in range(N):
            for oh in range(Ho):
                for ow in range(Wo):
                    s_np[n * H * W + (stride * oh) * W + stride * ow,
                         n * Ho * Wo + oh * Wo + ow] = 1.0
        sel = jnp.asarray(s_np).astype(matmul_dtype)

    return (w1_t, b1_c, wd_r, masks, w3_t, b3_c, sel)


@functools.partial(jax.jit, static_argnames=("stride",))
def bottleneck_forward(x_nchw, prepped, stride=1):
    """x_nchw: (N, Cin, H, W) float32 (PyTorch layout). Returns (N, Cout, Ho, Wo) f32."""
    w1_t, b1_c, wd_r, masks, w3_t, b3_c, sel = prepped
    N, Cin, H, W = x_nchw.shape
    Cout = w3_t.shape[0]
    Ho = (H - 1) // stride + 1
    Wo = (W - 1) // stride + 1
    L = N * H * W
    Lo = N * Ho * Wo

    # NCHW -> (Cin, N*H*W): channels alone on sublanes, (batch, H*W) flat on lanes.
    x2d = jnp.transpose(x_nchw, (1, 0, 2, 3)).reshape(Cin, L).astype(w1_t.dtype)

    args = [x2d, w1_t, b1_c, wd_r, masks, w3_t, b3_c]
    if stride > 1:
        args.append(sel)

    vmem_spec = pl.BlockSpec(memory_space=pltpu.MemorySpace.VMEM)
    out2d = pl.pallas_call(
        _make_kernel(W, L, stride),
        out_shape=jax.ShapeDtypeStruct((Cout, Lo), jnp.float32),
        in_specs=[vmem_spec] * len(args),
        out_specs=vmem_spec,
    )(*args)

    # (Cout, N, Ho, Wo) -> NCHW.
    return jnp.transpose(out2d.reshape(Cout, N, Ho, Wo), (1, 0, 2, 3))


def make_params(key, input_channel, output_channel, reduction_ratio=1):
    """Deterministic synthetic parameters; BN expressed as (scale, shift)."""
    Cmid = output_channel // reduction_ratio
    eps = 1e-5
    ks = jax.random.split(key, 15)

    def bn(kg, kb, km, kv, C):
        gamma = 1.0 + 0.1 * jax.random.normal(kg, (C,), jnp.float32)
        beta = 0.1 * jax.random.normal(kb, (C,), jnp.float32)
        mean = 0.1 * jax.random.normal(km, (C,), jnp.float32)
        var = jnp.abs(jax.random.normal(kv, (C,), jnp.float32)) + 0.5
        scale = gamma / jnp.sqrt(var + eps)
        shift = beta - mean * scale
        return scale.reshape(1, C), shift.reshape(1, C)

    # conv1: PyTorch weight (Cmid, Cin, 1, 1) stored as (Cin, Cmid)
    w1 = 0.2 * jax.random.normal(ks[0], (input_channel, Cmid), jnp.float32)
    s1, b1 = bn(ks[1], ks[2], ks[3], ks[4], Cmid)
    # depthwise: PyTorch weight (Cmid, 1, 3, 3) stored as (3, 3, Cmid)
    wd = 0.2 * jax.random.normal(ks[5], (3, 3, Cmid), jnp.float32)
    s2, b2 = bn(ks[6], ks[7], ks[8], ks[9], Cmid)
    # conv3: PyTorch weight (Cout, Cmid, 1, 1) stored as (Cmid, Cout)
    w3 = 0.2 * jax.random.normal(ks[10], (Cmid, output_channel), jnp.float32)
    s3, b3 = bn(ks[11], ks[12], ks[13], ks[14], output_channel)
    return (w1, s1, b1, wd, s2, b2, w3, s3, b3)


def reference_forward(x_nchw, params, stride=1):
    """Pure-JAX reference mirroring the PyTorch module (inference-mode BN)."""
    w1, s1, b1, wd, s2, b2, w3, s3, b3 = params
    Cmid = w1.shape[1]
    x = x_nchw.astype(jnp.float32)
    dn = ('NCHW', 'OIHW', 'NCHW')

    W1 = jnp.transpose(w1, (1, 0))[:, :, None, None]
    y = lax.conv_general_dilated(x, W1, (1, 1), 'VALID', dimension_numbers=dn)
    y = jnp.maximum(y * s1.reshape(1, -1, 1, 1) + b1.reshape(1, -1, 1, 1), 0.0)

    Wd = jnp.transpose(wd, (2, 0, 1))[:, None, :, :]
    y = lax.conv_general_dilated(y, Wd, (stride, stride), ((1, 1), (1, 1)),
                                 dimension_numbers=dn, feature_group_count=Cmid)
    y = y * s2.reshape(1, -1, 1, 1) + b2.reshape(1, -1, 1, 1)

    W3 = jnp.transpose(w3, (1, 0))[:, :, None, None]
    y = lax.conv_general_dilated(y, W3, (1, 1), 'VALID', dimension_numbers=dn)
    y = jnp.maximum(y * s3.reshape(1, -1, 1, 1) + b3.reshape(1, -1, 1, 1), 0.0)
    return y


if __name__ == "__main__":
    key = jax.random.PRNGKey(0)
    k_x, k_p = jax.random.split(key)

    N, Cin, H, W = 2, 4, 16, 16
    Cout, reduction_ratio = 8, 1

    x = jax.random.normal(k_x, (N, Cin, H, W), jnp.float32)
    params = make_params(k_p, Cin, Cout, reduction_ratio)

    for stride in (1, 2):
        ref = jax.block_until_ready(reference_forward(x, params, stride=stride))

        # f32 MXU operands: tight check that the kernel construction is exact.
        prepped_f32 = prepare_bottleneck(params, N, H, W, stride,
                                         matmul_dtype=jnp.float32)
        out_f32 = jax.block_until_ready(
            bottleneck_forward(x, prepped_f32, stride=stride))
        np.testing.assert_allclose(np.asarray(out_f32), np.asarray(ref),
                                   rtol=1e-4, atol=1e-4)

        # bf16 MXU operands (fast v6e/v7x path, f32 accumulation): looser tolerance.
        prepped_bf16 = prepare_bottleneck(params, N, H, W, stride,
                                          matmul_dtype=jnp.bfloat16)
        out_bf16 = jax.block_until_ready(
            bottleneck_forward(x, prepped_bf16, stride=stride))
        np.testing.assert_allclose(np.asarray(out_bf16), np.asarray(ref),
                                   rtol=3e-2, atol=3e-2)

    print("KERNEL_OK")
</pallas_src>

<mosaic_0001>
module attributes {stable_mosaic.version = 11 : i64} {
  func.func @kernel(%arg0: memref<4x512xf32, #tpu.memory_space<vmem>>, %arg1: memref<8x4xf32, #tpu.memory_space<vmem>>, %arg2: memref<8x1xf32, #tpu.memory_space<vmem>>, %arg3: memref<8x9xf32, #tpu.memory_space<vmem>>, %arg4: memref<4x512xf32, #tpu.memory_space<vmem>>, %arg5: memref<8x8xf32, #tpu.memory_space<vmem>>, %arg6: memref<8x1xf32, #tpu.memory_space<vmem>>, %arg7: memref<8x512xf32, #tpu.memory_space<vmem>>) attributes {dimension_semantics = [], scalar_prefetch = 0 : i64, scratch_operands = 0 : i64, tpu.core_type = #tpu.core_type<tc>} {
    %c0 = arith.constant 0 : index
    %c0_0 = arith.constant 0 : index
    %0 = vector.load %arg1[%c0, %c0_0] : memref<8x4xf32, #tpu.memory_space<vmem>>, vector<8x4xf32>
    %c0_1 = arith.constant 0 : index
    %c0_2 = arith.constant 0 : index
    %1 = vector.load %arg0[%c0_1, %c0_2] : memref<4x512xf32, #tpu.memory_space<vmem>>, vector<4x512xf32>
    %cst = arith.constant dense<0.000000e+00> : vector<8x512xf32>
    %2 = tpu.matmul %0, %1, %cst {dimension_numbers = #tpu.dot_dimension_numbers<[1], [0], [0], [1], [0, 0, 1, 1], [], []>} : vector<8x4xf32>, vector<4x512xf32>, vector<8x512xf32> -> vector<8x512xf32>
    %c0_3 = arith.constant 0 : index
    %c0_4 = arith.constant 0 : index
    %3 = vector.load %arg2[%c0_3, %c0_4] : memref<8x1xf32, #tpu.memory_space<vmem>>, vector<8x1xf32>
    %4 = vector.broadcast %3 : vector<8x1xf32> to vector<8x512xf32>
    %5 = arith.addf %2, %4 : vector<8x512xf32>
    %cst_5 = arith.constant 0.000000e+00 : f32
    %6 = vector.broadcast %cst_5 : f32 to vector<8x512xf32>
    %7 = arith.maximumf %5, %6 : vector<8x512xf32>
    %c0_6 = arith.constant 0 : index
    %c0_7 = arith.constant 0 : index
    %8 = vector.load %arg4[%c0_6, %c0_7] : memref<4x512xf32, #tpu.memory_space<vmem>>, vector<4x512xf32>
    %c0_8 = arith.constant 0 : index
    %c0_9 = arith.constant 0 : index
    %9 = vector.load %arg3[%c0_8, %c0_9] : memref<8x9xf32, #tpu.memory_space<vmem>>, vector<8x9xf32>
    %c1_i32 = arith.constant 1 : i32
    %10 = tpu.dynamic_rotate %7 by %c1_i32 dim 1 : vector<8x512xf32>, i32 -> vector<8x512xf32>
    %11 = vector.extract_strided_slice %8 {offsets = [0, 0], sizes = [1, 512], strides = [1, 1]} : vector<4x512xf32> to vector<1x512xf32>
    %12 = vector.broadcast %11 : vector<1x512xf32> to vector<8x512xf32>
    %13 = arith.mulf %10, %12 : vector<8x512xf32>
    %c511_i32 = arith.constant 511 : i32
    %14 = tpu.dynamic_rotate %7 by %c511_i32 dim 1 : vector<8x512xf32>, i32 -> vector<8x512xf32>
    %15 = vector.extract_strided_slice %8 {offsets = [1, 0], sizes = [1, 512], strides = [1, 1]} : vector<4x512xf32> to vector<1x512xf32>
    %16 = vector.broadcast %15 : vector<1x512xf32> to vector<8x512xf32>
    %17 = arith.mulf %14, %16 : vector<8x512xf32>
    %18 = vector.extract_strided_slice %9 {offsets = [0, 0], sizes = [8, 1], strides = [1, 1]} : vector<8x9xf32> to vector<8x1xf32>
    %19 = vector.broadcast %18 : vector<8x1xf32> to vector<8x512xf32>
    %20 = arith.mulf %13, %19 : vector<8x512xf32>
    %21 = vector.extract_strided_slice %9 {offsets = [0, 1], sizes = [8, 1], strides = [1, 1]} : vector<8x9xf32> to vector<8x1xf32>
    %22 = vector.broadcast %21 : vector<8x1xf32> to vector<8x512xf32>
    %23 = arith.mulf %7, %22 : vector<8x512xf32>
    %24 = arith.addf %20, %23 : vector<8x512xf32>
    %25 = vector.extract_strided_slice %9 {offsets = [0, 2], sizes = [8, 1], strides = [1, 1]} : vector<8x9xf32> to vector<8x1xf32>
    %26 = vector.broadcast %25 : vector<8x1xf32> to vector<8x512xf32>
    %27 = arith.mulf %17, %26 : vector<8x512xf32>
    %28 = arith.addf %24, %27 : vector<8x512xf32>
    %c16_i32 = arith.constant 16 : i32
    %29 = tpu.dynamic_rotate %28 by %c16_i32 dim 1 : vector<8x512xf32>, i32 -> vector<8x512xf32>
    %30 = vector.extract_strided_slice %8 {offsets = [2, 0], sizes = [1, 512], strides = [1, 1]} : vector<4x512xf32> to vector<1x512xf32>
    %31 = vector.broadcast %30 : vector<1x512xf32> to vector<8x512xf32>
    %32 = arith.mulf %29, %31 : vector<8x512xf32>
    %33 = vector.extract_strided_slice %9 {offsets = [0, 3], sizes = [8, 1], strides = [1, 1]} : vector<8x9xf32> to vector<8x1xf32>
    %34 = vector.broadcast %33 : vector<8x1xf32> to vector<8x512xf32>
    %35 = arith.mulf %13, %34 : vector<8x512xf32>
    %36 = vector.extract_strided_slice %9 {offsets = [0, 4], sizes = [8, 1], strides = [1, 1]} : vector<8x9xf32> to vector<8x1xf32>
    %37 = vector.broadcast %36 : vector<8x1xf32> to vector<8x512xf32>
    %38 = arith.mulf %7, %37 : vector<8x512xf32>
    %39 = arith.addf %35, %38 : vector<8x512xf32>
    %40 = vector.extract_strided_slice %9 {offsets = [0, 5], sizes = [8, 1], strides = [1, 1]} : vector<8x9xf32> to vector<8x1xf32>
    %41 = vector.broadcast %40 : vector<8x1xf32> to vector<8x512xf32>
    %42 = arith.mulf %17, %41 : vector<8x512xf32>
    %43 = arith.addf %39, %42 : vector<8x512xf32>
    %44 = arith.addf %32, %43 : vector<8x512xf32>
    %45 = vector.extract_strided_slice %9 {offsets = [0, 6], sizes = [8, 1], strides = [1, 1]} : vector<8x9xf32> to vector<8x1xf32>
    %46 = vector.broadcast %45 : vector<8x1xf32> to vector<8x512xf32>
    %47 = arith.mulf %13, %46 : vector<8x512xf32>
    %48 = vector.extract_strided_slice %9 {offsets = [0, 7], sizes = [8, 1], strides = [1, 1]} : vector<8x9xf32> to vector<8x1xf32>
    %49 = vector.broadcast %48 : vector<8x1xf32> to vector<8x512xf32>
    %50 = arith.mulf %7, %49 : vector<8x512xf32>
    %51 = arith.addf %47, %50 : vector<8x512xf32>
    %52 = vector.extract_strided_slice %9 {offsets = [0, 8], sizes = [8, 1], strides = [1, 1]} : vector<8x9xf32> to vector<8x1xf32>
    %53 = vector.broadcast %52 : vector<8x1xf32> to vector<8x512xf32>
    %54 = arith.mulf %17, %53 : vector<8x512xf32>
    %55 = arith.addf %51, %54 : vector<8x512xf32>
    %c496_i32 = arith.constant 496 : i32
    %56 = tpu.dynamic_rotate %55 by %c496_i32 dim 1 : vector<8x512xf32>, i32 -> vector<8x512xf32>
    %57 = vector.extract_strided_slice %8 {offsets = [3, 0], sizes = [1, 512], strides = [1, 1]} : vector<4x512xf32> to vector<1x512xf32>
    %58 = vector.broadcast %57 : vector<1x512xf32> to vector<8x512xf32>
    %59 = arith.mulf %56, %58 : vector<8x512xf32>
    %60 = arith.addf %44, %59 : vector<8x512xf32>
    %c0_10 = arith.constant 0 : index
    %c0_11 = arith.constant 0 : index
    %61 = vector.load %arg5[%c0_10, %c0_11] : memref<8x8xf32, #tpu.memory_space<vmem>>, vector<8x8xf32>
    %cst_12 = arith.constant dense<0.000000e+00> : vector<8x512xf32>
    %62 = tpu.matmul %61, %60, %cst_12 {dimension_numbers = #tpu.dot_dimension_numbers<[1], [0], [0], [1], [0, 0, 1, 1], [], []>} : vector<8x8xf32>, vector<8x512xf32>, vector<8x512xf32> -> vector<8x512xf32>
    %c0_13 = arith.constant 0 : index
    %c0_14 = arith.constant 0 : index
    %63 = vector.load %arg6[%c0_13, %c0_14] : memref<8x1xf32, #tpu.memory_space<vmem>>, vector<8x1xf32>
    %64 = vector.broadcast %63 : vector<8x1xf32> to vector<8x512xf32>
    %65 = arith.addf %62, %64 : vector<8x512xf32>
    %cst_15 = arith.constant 0.000000e+00 : f32
    %66 = vector.broadcast %cst_15 : f32 to vector<8x512xf32>
    %67 = arith.maximumf %65, %66 : vector<8x512xf32>
    %c0_16 = arith.constant 0 : index
    %c0_17 = arith.constant 0 : index
    %68 = vector.load %arg7[%c0_16, %c0_17] : memref<8x512xf32, #tpu.memory_space<vmem>>, vector<8x512xf32>
    tpu.vector_store %arg7[%c0_16, %c0_17], %67 {strides = array<i32>} : memref<8x512xf32, #tpu.memory_space<vmem>>, vector<8x512xf32>,
    return
  }
}

</mosaic_0001>

<llo_original>
// kernel: bottleneck_forward.1
$region0: #{bottleneck_forward.1}
  #allocation0 [shape = 'u32[]', space=smem, size = 0x4, offset = 0x4, fixed_abs, tag = 'smem constant byte address 0x4 - core index']
  #allocation1 [shape = 'u32[144,128]{1,0:T(1,128)}', space=vmem, size = 0x12000, scoped, tag = 'internal scratch']
  %s0 = inlined_call_operand.vmem [shape: f32[4,512], index: 0, kind: input, shape index: {}]
  %s1 = inlined_call_operand.vmem [shape: f32[8,4], index: 1, kind: input, shape index: {}]
  %s2 = inlined_call_operand.vmem [shape: f32[8,1], index: 2, kind: input, shape index: {}]
  %s3 = inlined_call_operand.vmem [shape: f32[8,9], index: 3, kind: input, shape index: {}]
  %s4 = inlined_call_operand.vmem [shape: f32[4,512], index: 4, kind: input, shape index: {}]
  %s5 = inlined_call_operand.vmem [shape: f32[8,8], index: 5, kind: input, shape index: {}]
  %s6 = inlined_call_operand.vmem [shape: f32[8,1], index: 6, kind: input, shape index: {}]
  %s7 = inlined_call_operand.vmem [shape: f32[8,512], index: 7, kind: output, shape index: {}]
  %s8 = sld [smem:[#allocation0]]
  $region38: #{bottleneck_forward.1} parent=0
    _
  %s10 = ssub.s32 1, %s8
  %s11 = scalar_select 0, %s10, %s8
  // Predicated region
  $region2: #{bottleneck_forward.1} parent=0 // pred_check
    _
  $region3: #{bottleneck_forward.1} parent=0 // pred_check_branch
    %13 = sbr.rel (0) target = $region5
  $region4: #{bottleneck_forward.1} parent=0 // pred_region
    _
  $region5: #{bottleneck_forward.1} parent=0 // pred_fallthru
    _
  // Predicated region
  $region6: #{bottleneck_forward.1} parent=0 // pred_check
    _
  $region7: #{bottleneck_forward.1} parent=0 // pred_check_branch
    %15 = sbr.rel (0) target = $region9
  $region8: #{bottleneck_forward.1} parent=0 // pred_region
    _
  $region9: #{bottleneck_forward.1} parent=0 // pred_fallthru
    _
  // Predicated region
  $region10: #{bottleneck_forward.1} parent=0 // pred_check
    _
  $region11: #{bottleneck_forward.1} parent=0 // pred_check_branch
    %17 = sbr.rel (0) target = $region13
  $region12: #{bottleneck_forward.1} parent=0 // pred_region
    _
  $region13: #{bottleneck_forward.1} parent=0 // pred_fallthru
    _
  // Predicated region
  $region14: #{bottleneck_forward.1} parent=0 // pred_check
    _
  $region15: #{bottleneck_forward.1} parent=0 // pred_check_branch
    %19 = sbr.rel (0) target = $region17
  $region16: #{bottleneck_forward.1} parent=0 // pred_region
    _
  $region17: #{bottleneck_forward.1} parent=0 // pred_fallthru
    _
  // Predicated region
  $region18: #{bottleneck_forward.1} parent=0 // pred_check
    _
  $region19: #{bottleneck_forward.1} parent=0 // pred_check_branch
    %21 = sbr.rel (0) target = $region21
  $region20: #{bottleneck_forward.1} parent=0 // pred_region
    _
  $region21: #{bottleneck_forward.1} parent=0 // pred_fallthru
    _
  // Predicated region
  $region22: #{bottleneck_forward.1} parent=0 // pred_check
    _
  $region23: #{bottleneck_forward.1} parent=0 // pred_check_branch
    %23 = sbr.rel (0) target = $region25
  $region24: #{bottleneck_forward.1} parent=0 // pred_region
    _
  $region25: #{bottleneck_forward.1} parent=0 // pred_fallthru
    _
  // Predicated region
  $region26: #{bottleneck_forward.1} parent=0 // pred_check
    _
  $region27: #{bottleneck_forward.1} parent=0 // pred_check_branch
    %25 = sbr.rel (0) target = $region29
  $region28: #{bottleneck_forward.1} parent=0 // pred_region
    _
  $region29: #{bottleneck_forward.1} parent=0 // pred_fallthru
    _
  %v26 = vld [vmem:[%s1] sm:$0xff]
  %v27 = vld [vmem:[%s0] sm:$0xff]
  %v28 = vld [vmem:[%s0 + $0x8] sm:$0xff]
  %v29 = vld [vmem:[%s2] sm:$0xff]
  %31 = vset.pattern.permute.xlu0 0
  %32 = vperm.xlu0 %31, %v29
  %v33 = vpop.permute.xlu0 %32
  %v37 = vcombine.high %v27, %v27
  %v38 = vcombine.high %v28, %v28
  %vm39 = vcmask 31744
  %v41 = vsel %vm39, %v26, 0
  %vm43 = vcmask 1043456
  %v44 = vsel %vm43, %v27, 0
  %v46 = vsel %vm43, %v37, 0
  %v48 = vsel %vm43, %v28, 0
  %v50 = vsel %vm43, %v38, 0
  %52 = vmatprep.subr.mxu0 %v46
  %53 = vmatpush1.msra.mxu0 %v44
  %54 = vmatprep.subr.mxu0 0.0
  %55 = vmatpush1.msra.mxu0 0.0
  %56 = vmatprep.subr.mxu0 0.0
  %57 = vmatpush1.msra.mxu0 0.0
  %58 = vmatprep.subr.mxu0 0.0
  %59 = vmatpush1.msra.mxu0 0.0
  %60 = vmatprep.subr.mxu0 0.0
  %61 = vmatpush1.msra.mxu0 0.0
  %62 = vmatprep.subr.mxu0 0.0
  %63 = vmatpush1.msra.mxu0 0.0
  %64 = vmatprep.subr.mxu0 0.0
  %65 = vmatpush1.msra.mxu0 0.0
  %66 = vmatprep.subr.mxu0 0.0
  %67 = vmatpush1.msra.mxu0 0.0
  %68 = vmatprep.subr.mxu0 0.0
  %69 = vmatpush1.msra.mxu0 0.0
  %70 = vmatprep.subr.mxu0 0.0
  %71 = vmatpush1.msra.mxu0 0.0
  %72 = vmatprep.subr.mxu0 0.0
  %73 = vmatpush1.msra.mxu0 0.0
  %74 = vmatprep.subr.mxu0 0.0
  %75 = vmatpush1.msra.mxu0 0.0
  %76 = vmatprep.subr.mxu0 0.0
  %77 = vmatpush1.msra.mxu0 0.0
  %78 = vmatprep.subr.mxu0 0.0
  %79 = vmatpush1.msra.mxu0 0.0
  %80 = vmatprep.subr.mxu0 0.0
  %81 = vmatpush1.msra.mxu0 0.0
  %82 = vmatprep.subr.mxu0 0.0
  %83 = vmatpush1.msra.mxu0 0.0
  %84 = vmatprep.subr.mxu0 0.0
  %85 = vmatpush1.msra.mxu0 0.0
  %86 = vmatprep.subr.mxu0 0.0
  %87 = vmatpush1.msra.mxu0 0.0
  %88 = vmatprep.subr.mxu0 0.0
  %89 = vmatpush1.msra.mxu0 0.0
  %90 = vmatprep.subr.mxu0 0.0
  %91 = vmatpush1.msra.mxu0 0.0
  %92 = vmatprep.subr.mxu0 0.0
  %93 = vmatpush1.msra.mxu0 0.0
  %94 = vmatprep.subr.mxu0 0.0
  %95 = vmatpush1.msra.mxu0 0.0
  %96 = vmatprep.subr.mxu0 0.0
  %97 = vmatpush1.msra.mxu0 0.0
  %98 = vmatprep.subr.mxu0 0.0
  %99 = vmatpush1.msra.mxu0 0.0
  %100 = vmatprep.subr.mxu0 0.0
  %101 = vmatpush1.msra.mxu0 0.0
  %102 = vmatprep.subr.mxu0 0.0
  %103 = vmatpush1.msra.mxu0 0.0
  %104 = vmatprep.subr.mxu0 0.0
  %105 = vmatpush1.msra.mxu0 0.0
  %106 = vmatprep.subr.mxu0 0.0
  %107 = vmatpush1.msra.mxu0 0.0
  %108 = vmatprep.subr.mxu0 0.0
  %109 = vmatpush1.msra.mxu0 0.0
  %110 = vmatprep.subr.mxu0 0.0
  %111 = vmatpush1.msra.mxu0 0.0
  %112 = vmatprep.subr.mxu0 0.0
  %113 = vmatpush1.msra.mxu0 0.0
  %114 = vmatprep.subr.mxu0 0.0
  %115 = vmatpush1.msra.mxu0 0.0
  %116 = vmatprep.mubr.f32.mxu0 0.0
  %117 = vmatmul.mubr.f32.gmra.mrb[0].mxu0 %v41
  %v118 = vpop.f32.mrb[0].mxu0
  %v119 = vadd.f32 %v33, %v118
  %v120 = vpop.f32.mrb[0].mxu0
  %v121 = vadd.f32 %v33, %v120
  %122 = vdwg.mxu0
  %123 = vmatprep.subr.mxu0 %v50
  %124 = vmatpush1.msra.mxu0 %v48
  %125 = vmatprep.subr.mxu0 0.0
  %126 = vmatpush1.msra.mxu0 0.0
  %127 = vmatprep.subr.mxu0 0.0
  %128 = vmatpush1.msra.mxu0 0.0
  %129 = vmatprep.subr.mxu0 0.0
  %130 = vmatpush1.msra.mxu0 0.0
  %131 = vmatprep.subr.mxu0 0.0
  %132 = vmatpush1.msra.mxu0 0.0
  %133 = vmatprep.subr.mxu0 0.0
  %134 = vmatpush1.msra.mxu0 0.0
  %135 = vmatprep.subr.mxu0 0.0
  %136 = vmatpush1.msra.mxu0 0.0
  %137 = vmatprep.subr.mxu0 0.0
  %138 = vmatpush1.msra.mxu0 0.0
  %139 = vmatprep.subr.mxu0 0.0
  %140 = vmatpush1.msra.mxu0 0.0
  %141 = vmatprep.subr.mxu0 0.0
  %142 = vmatpush1.msra.mxu0 0.0
  %143 = vmatprep.subr.mxu0 0.0
  %144 = vmatpush1.msra.mxu0 0.0
  %145 = vmatprep.subr.mxu0 0.0
  %146 = vmatpush1.msra.mxu0 0.0
  %147 = vmatprep.subr.mxu0 0.0
  %148 = vmatpush1.msra.mxu0 0.0
  %149 = vmatprep.subr.mxu0 0.0
  %150 = vmatpush1.msra.mxu0 0.0
  %151 = vmatprep.subr.mxu0 0.0
  %152 = vmatpush1.msra.mxu0 0.0
  %153 = vmatprep.subr.mxu0 0.0
  %154 = vmatpush1.msra.mxu0 0.0
  %155 = vmatprep.subr.mxu0 0.0
  %156 = vmatpush1.msra.mxu0 0.0
  %157 = vmatprep.subr.mxu0 0.0
  %158 = vmatpush1.msra.mxu0 0.0
  %159 = vmatprep.subr.mxu0 0.0
  %160 = vmatpush1.msra.mxu0 0.0
  %161 = vmatprep.subr.mxu0 0.0
  %162 = vmatpush1.msra.mxu0 0.0
  %163 = vmatprep.subr.mxu0 0.0
  %164 = vmatpush1.msra.mxu0 0.0
  %165 = vmatprep.subr.mxu0 0.0
  %166 = vmatpush1.msra.mxu0 0.0
  %167 = vmatprep.subr.mxu0 0.0
  %168 = vmatpush1.msra.mxu0 0.0
  %169 = vmatprep.subr.mxu0 0.0
  %170 = vmatpush1.msra.mxu0 0.0
  %171 = vmatprep.subr.mxu0 0.0
  %172 = vmatpush1.msra.mxu0 0.0
  %173 = vmatprep.subr.mxu0 0.0
  %174 = vmatpush1.msra.mxu0 0.0
  %175 = vmatprep.subr.mxu0 0.0
  %176 = vmatpush1.msra.mxu0 0.0
  %177 = vmatprep.subr.mxu0 0.0
  %178 = vmatpush1.msra.mxu0 0.0
  %179 = vmatprep.subr.mxu0 0.0
  %180 = vmatpush1.msra.mxu0 0.0
  %181 = vmatprep.subr.mxu0 0.0
  %182 = vmatpush1.msra.mxu0 0.0
  %183 = vmatprep.subr.mxu0 0.0
  %184 = vmatpush1.msra.mxu0 0.0
  %185 = vmatprep.subr.mxu0 0.0
  %186 = vmatpush1.msra.mxu0 0.0
  %187 = vmatprep.mubr.f32.mxu0 0.0
  %188 = vmatmul.mubr.f32.gmra.mrb[0].mxu0 %v41
  %v189 = vpop.f32.mrb[0].mxu0
  %v190 = vadd.f32 %v33, %v189
  %v191 = vpop.f32.mrb[0].mxu0
  %v192 = vadd.f32 %v33, %v191
  %193 = vdwg.mxu0
  %v194 = vmax.f32 %v119, 0.0
  %v195 = vmax.f32 %v121, 0.0
  %v196 = vmax.f32 %v190, 0.0
  %v197 = vmax.f32 %v192, 0.0
  %v198 = vld [vmem:[%s4] sm:$0xff]
  %v199 = vld [vmem:[%s4 + $0x8] sm:$0xff]
  %v200 = vld [vmem:[%s3] sm:$0xff]
  %201 = vrot.lane.b32.xlu0 %v194, 1
  %v202 = vpop.permute.xlu0 %201
  %203 = vrot.lane.b32.xlu0 %v195, 1
  %v204 = vpop.permute.xlu0 %203
  %205 = vrot.lane.b32.xlu0 %v196, 1
  %v206 = vpop.permute.xlu0 %205
  %207 = vrot.lane.b32.xlu0 %v197, 1
  %v208 = vpop.permute.xlu0 %207
  %v209 = vlaneseq
  %v210 = vand.u32 %v209, 127
  %vm211 = vcmp.lt.s32.totalorder %v210, 1
  %v212 = vsel %vm211, %v206, %v208
  %v213 = vsel %vm211, %v204, %v206
  %v214 = vsel %vm211, %v202, %v204
  %v215 = vsel %vm211, %v208, %v202
  %v218 = vlaneseq
  %v219 = vshrl.u32 %v218, 7
  %v220 = vsub.s32 0, %v219
  %v221 = vrot.slane %v198, %v220
  %v222 = vlaneseq
  %v223 = vshrl.u32 %v222, 7
  %v224 = vsub.s32 4, %v223
  %v225 = vrot.slane %v198, %v224
  %v226 = vlaneseq
  %v227 = vshrl.u32 %v226, 7
  %v228 = vsub.s32 0, %v227
  %v229 = vrot.slane %v199, %v228
  %v230 = vlaneseq
  %v231 = vshrl.u32 %v230, 7
  %v232 = vsub.s32 4, %v231
  %v233 = vrot.slane %v199, %v232
  %v238 = vlaneseq
  %v239 = vshrl.u32 %v238, 7
  %v240 = vsub.s32 0, %v239
  %v241 = vrot.slane %v221, %v240
  %v242 = vlaneseq
  %v243 = vshrl.u32 %v242, 7
  %v244 = vsub.s32 0, %v243
  %v245 = vrot.slane %v225, %v244
  %v246 = vlaneseq
  %v247 = vshrl.u32 %v246, 7
  %v248 = vsub.s32 0, %v247
  %v249 = vrot.slane %v229, %v248
  %v250 = vlaneseq
  %v251 = vshrl.u32 %v250, 7
  %v252 = vsub.s32 0, %v251
  %v253 = vrot.slane %v233, %v252
  %v254 = vmul.f32 %v215, %v241
  %v255 = vmul.f32 %v214, %v245
  %v256 = vmul.f32 %v213, %v249
  %v257 = vmul.f32 %v212, %v253
  %258 = vrot.lane.b32.xlu0 %v194, 127
  %v259 = vpop.permute.xlu0 %258
  %260 = vrot.lane.b32.xlu0 %v195, 127
  %v261 = vpop.permute.xlu0 %260
  %262 = vrot.lane.b32.xlu0 %v196, 127
  %v263 = vpop.permute.xlu0 %262
  %264 = vrot.lane.b32.xlu0 %v197, 127
  %v265 = vpop.permute.xlu0 %264
  %vm266 = vcmp.lt.s32.totalorder %v210, 127
  %v267 = vsel %vm266, %v263, %v265
  %v268 = vsel %vm266, %v261, %v263
  %v269 = vsel %vm266, %v259, %v261
  %v270 = vsel %vm266, %v265, %v259
  %v271 = vlaneseq
  %v272 = vshrl.u32 %v271, 7
  %v273 = vsub.s32 1, %v272
  %v274 = vrot.slane %v198, %v273
  %v275 = vlaneseq
  %v276 = vshrl.u32 %v275, 7
  %v277 = vsub.s32 5, %v276
  %v278 = vrot.slane %v198, %v277
  %v279 = vlaneseq
  %v280 = vshrl.u32 %v279, 7
  %v281 = vsub.s32 1, %v280
  %v282 = vrot.slane %v199, %v281
  %v283 = vlaneseq
  %v284 = vshrl.u32 %v283, 7
  %v285 = vsub.s32 5, %v284
  %v286 = vrot.slane %v199, %v285
  %v291 = vlaneseq
  %v292 = vshrl.u32 %v291, 7
  %v293 = vsub.s32 1, %v292
  %v294 = vrot.slane %v274, %v293
  %v295 = vlaneseq
  %v296 = vshrl.u32 %v295, 7
  %v297 = vsub.s32 1, %v296
  %v298 = vrot.slane %v278, %v297
  %v299 = vlaneseq
  %v300 = vshrl.u32 %v299, 7
  %v301 = vsub.s32 1, %v300
  %v302 = vrot.slane %v282, %v301
  %v303 = vlaneseq
  %v304 = vshrl.u32 %v303, 7
  %v305 = vsub.s32 1, %v304
  %v306 = vrot.slane %v286, %v305
  %v307 = vmul.f32 %v269, %v294
  %v308 = vmul.f32 %v268, %v298
  %v309 = vmul.f32 %v267, %v302
  %v310 = vmul.f32 %v270, %v306
  %312 = vset.pattern.permute.xlu0 0
  %313 = vperm.xlu0 %312, %v200
  %v314 = vpop.permute.xlu0 %313
  %v316 = vmul.f32 %v254, %v314
  %v317 = vmul.f32 %v255, %v314
  %v318 = vmul.f32 %v256, %v314
  %v319 = vmul.f32 %v257, %v314
  %320 = vset.pattern.permute.xlu0 1
  %321 = vperm.xlu0 %320, %v200
  %v322 = vpop.permute.xlu0 %321
  %v324 = vmul.f32 %v194, %v322
  %v325 = vmul.f32 %v195, %v322
  %v326 = vmul.f32 %v196, %v322
  %v327 = vmul.f32 %v197, %v322
  %v328 = vadd.f32 %v316, %v324
  %v329 = vadd.f32 %v317, %v325
  %v330 = vadd.f32 %v318, %v326
  %v331 = vadd.f32 %v319, %v327
  %332 = vset.pattern.permute.xlu0 2
  %333 = vperm.xlu0 %332, %v200
  %v334 = vpop.permute.xlu0 %333
  %v336 = vmul.f32 %v307, %v334
  %v337 = vmul.f32 %v308, %v334
  %v338 = vmul.f32 %v309, %v334
  %v339 = vmul.f32 %v310, %v334
  %v340 = vadd.f32 %v328, %v336
  %v341 = vadd.f32 %v329, %v337
  %v342 = vadd.f32 %v330, %v338
  %v343 = vadd.f32 %v331, %v339
  %344 = vrot.lane.b32.xlu0 %v340, 16
  %v345 = vpop.permute.xlu0 %344
  %346 = vrot.lane.b32.xlu0 %v341, 16
  %v347 = vpop.permute.xlu0 %346
  %348 = vrot.lane.b32.xlu0 %v342, 16
  %v349 = vpop.permute.xlu0 %348
  %350 = vrot.lane.b32.xlu0 %v343, 16
  %v351 = vpop.permute.xlu0 %350
  %vm352 = vcmp.lt.s32.totalorder %v210, 16
  %v353 = vsel %vm352, %v349, %v351
  %v354 = vsel %vm352, %v347, %v349
  %v355 = vsel %vm352, %v345, %v347
  %v356 = vsel %vm352, %v351, %v345
  %v357 = vlaneseq
  %v358 = vshrl.u32 %v357, 7
  %v359 = vsub.s32 2, %v358
  %v360 = vrot.slane %v198, %v359
  %v361 = vlaneseq
  %v362 = vshrl.u32 %v361, 7
  %v363 = vsub.s32 6, %v362
  %v364 = vrot.slane %v198, %v363
  %v365 = vlaneseq
  %v366 = vshrl.u32 %v365, 7
  %v367 = vsub.s32 2, %v366
  %v368 = vrot.slane %v199, %v367
  %v369 = vlaneseq
  %v370 = vshrl.u32 %v369, 7
  %v371 = vsub.s32 6, %v370
  %v372 = vrot.slane %v199, %v371
  %v377 = vlaneseq
  %v378 = vshrl.u32 %v377, 7
  %v379 = vsub.s32 2, %v378
  %v380 = vrot.slane %v360, %v379
  %v381 = vlaneseq
  %v382 = vshrl.u32 %v381, 7
  %v383 = vsub.s32 2, %v382
  %v384 = vrot.slane %v364, %v383
  %v385 = vlaneseq
  %v386 = vshrl.u32 %v385, 7
  %v387 = vsub.s32 2, %v386
  %v388 = vrot.slane %v368, %v387
  %v389 = vlaneseq
  %v390 = vshrl.u32 %v389, 7
  %v391 = vsub.s32 2, %v390
  %v392 = vrot.slane %v372, %v391
  %v393 = vmul.f32 %v356, %v380
  %v394 = vmul.f32 %v355, %v384
  %v395 = vmul.f32 %v354, %v388
  %v396 = vmul.f32 %v353, %v392
  %397 = vset.pattern.permute.xlu0 3
  %398 = vperm.xlu0 %397, %v200
  %v399 = vpop.permute.xlu0 %398
  %v401 = vmul.f32 %v254, %v399
  %v402 = vmul.f32 %v255, %v399
  %v403 = vmul.f32 %v256, %v399
  %v404 = vmul.f32 %v257, %v399
  %405 = vset.pattern.permute.xlu0 4
  %406 = vperm.xlu0 %405, %v200
  %v407 = vpop.permute.xlu0 %406
  %v409 = vmul.f32 %v194, %v407
  %v410 = vmul.f32 %v195, %v407
  %v411 = vmul.f32 %v196, %v407
  %v412 = vmul.f32 %v197, %v407
  %v413 = vadd.f32 %v401, %v409
  %v414 = vadd.f32 %v402, %v410
  %v415 = vadd.f32 %v403, %v411
  %v416 = vadd.f32 %v404, %v412
  %417 = vset.pattern.permute.xlu0 5
  %418 = vperm.xlu0 %417, %v200
  %v419 = vpop.permute.xlu0 %418
  %v421 = vmul.f32 %v307, %v419
  %v422 = vmul.f32 %v308, %v419
  %v423 = vmul.f32 %v309, %v419
  %v424 = vmul.f32 %v310, %v419
  %v425 = vadd.f32 %v413, %v421
  %v426 = vadd.f32 %v414, %v422
  %v427 = vadd.f32 %v415, %v423
  %v428 = vadd.f32 %v416, %v424
  %v429 = vadd.f32 %v393, %v425
  %v430 = vadd.f32 %v394, %v426
  %v431 = vadd.f32 %v395, %v427
  %v432 = vadd.f32 %v396, %v428
  %433 = vset.pattern.permute.xlu0 6
  %434 = vperm.xlu0 %433, %v200
  %v435 = vpop.permute.xlu0 %434
  %v437 = vmul.f32 %v254, %v435
  %v438 = vmul.f32 %v255, %v435
  %v439 = vmul.f32 %v256, %v435
  %v440 = vmul.f32 %v257, %v435
  %441 = vset.pattern.permute.xlu0 7
  %442 = vperm.xlu0 %441, %v200
  %v443 = vpop.permute.xlu0 %442
  %v445 = vmul.f32 %v194, %v443
  %v446 = vmul.f32 %v195, %v443
  %v447 = vmul.f32 %v196, %v443
  %v448 = vmul.f32 %v197, %v443
  %v449 = vadd.f32 %v437, %v445
  %v450 = vadd.f32 %v438, %v446
  %v451 = vadd.f32 %v439, %v447
  %v452 = vadd.f32 %v440, %v448
  %453 = vset.pattern.permute.xlu0 8
  %454 = vperm.xlu0 %453, %v200
  %v455 = vpop.permute.xlu0 %454
  %v457 = vmul.f32 %v307, %v455
  %v458 = vmul.f32 %v308, %v455
  %v459 = vmul.f32 %v309, %v455
  %v460 = vmul.f32 %v310, %v455
  %v461 = vadd.f32 %v449, %v457
  %v462 = vadd.f32 %v450, %v458
  %v463 = vadd.f32 %v451, %v459
  %v464 = vadd.f32 %v452, %v460
  %465 = vrot.lane.b32.xlu0 %v461, 112
  %v466 = vpop.permute.xlu0 %465
  %467 = vrot.lane.b32.xlu0 %v462, 112
  %v468 = vpop.permute.xlu0 %467
  %469 = vrot.lane.b32.xlu0 %v463, 112
  %v470 = vpop.permute.xlu0 %469
  %471 = vrot.lane.b32.xlu0 %v464, 112
  %v472 = vpop.permute.xlu0 %471
  %vm473 = vcmp.lt.s32.totalorder %v210, 112
  %v474 = vsel %vm473, %v470, %v472
  %v475 = vsel %vm473, %v468, %v470
  %v476 = vsel %vm473, %v466, %v468
  %v477 = vsel %vm473, %v472, %v466
  %v478 = vlaneseq
  %v479 = vshrl.u32 %v478, 7
  %v480 = vsub.s32 3, %v479
  %v481 = vrot.slane %v198, %v480
  %v482 = vlaneseq
  %v483 = vshrl.u32 %v482, 7
  %v484 = vsub.s32 7, %v483
  %v485 = vrot.slane %v198, %v484
  %v486 = vlaneseq
  %v487 = vshrl.u32 %v486, 7
  %v488 = vsub.s32 3, %v487
  %v489 = vrot.slane %v199, %v488
  %v490 = vlaneseq
  %v491 = vshrl.u32 %v490, 7
  %v492 = vsub.s32 7, %v491
  %v493 = vrot.slane %v199, %v492
  %v498 = vlaneseq
  %v499 = vshrl.u32 %v498, 7
  %v500 = vsub.s32 3, %v499
  %v501 = vrot.slane %v481, %v500
  %v502 = vlaneseq
  %v503 = vshrl.u32 %v502, 7
  %v504 = vsub.s32 3, %v503
  %v505 = vrot.slane %v485, %v504
  %v506 = vlaneseq
  %v507 = vshrl.u32 %v506, 7
  %v508 = vsub.s32 3, %v507
  %v509 = vrot.slane %v489, %v508
  %v510 = vlaneseq
  %v511 = vshrl.u32 %v510, 7
  %v512 = vsub.s32 3, %v511
  %v513 = vrot.slane %v493, %v512
  %v514 = vmul.f32 %v476, %v501
  %v515 = vmul.f32 %v475, %v505
  %v516 = vmul.f32 %v474, %v509
  %v517 = vmul.f32 %v477, %v513
  %v518 = vadd.f32 %v429, %v514
  %v519 = vadd.f32 %v430, %v515
  %v520 = vadd.f32 %v431, %v516
  %v521 = vadd.f32 %v432, %v517
  %v522 = vld [vmem:[%s5] sm:$0xff]
  %v523 = vld [vmem:[%s6] sm:$0xff]
  %525 = vset.pattern.permute.xlu0 0
  %526 = vperm.xlu0 %525, %v523
  %v527 = vpop.permute.xlu0 %526
  %vm529 = vcmask 64512
  %v531 = vsel %vm529, %v522, 0
  %533 = vmatprep.subr.mxu0 %v519
  %534 = vmatpush1.msra.mxu0 %v518
  %535 = vmatprep.subr.mxu0 0.0
  %536 = vmatpush1.msra.mxu0 0.0
  %537 = vmatprep.subr.mxu0 0.0
  %538 = vmatpush1.msra.mxu0 0.0
  %539 = vmatprep.subr.mxu0 0.0
  %540 = vmatpush1.msra.mxu0 0.0
  %541 = vmatprep.subr.mxu0 0.0
  %542 = vmatpush1.msra.mxu0 0.0
  %543 = vmatprep.subr.mxu0 0.0
  %544 = vmatpush1.msra.mxu0 0.0
  %545 = vmatprep.subr.mxu0 0.0
  %546 = vmatpush1.msra.mxu0 0.0
  %547 = vmatprep.subr.mxu0 0.0
  %548 = vmatpush1.msra.mxu0 0.0
  %549 = vmatprep.subr.mxu0 0.0
  %550 = vmatpush1.msra.mxu0 0.0
  %551 = vmatprep.subr.mxu0 0.0
  %552 = vmatpush1.msra.mxu0 0.0
  %553 = vmatprep.subr.mxu0 0.0
  %554 = vmatpush1.msra.mxu0 0.0
  %555 = vmatprep.subr.mxu0 0.0
  %556 = vmatpush1.msra.mxu0 0.0
  %557 = vmatprep.subr.mxu0 0.0
  %558 = vmatpush1.msra.mxu0 0.0
  %559 = vmatprep.subr.mxu0 0.0
  %560 = vmatpush1.msra.mxu0 0.0
  %561 = vmatprep.subr.mxu0 0.0
  %562 = vmatpush1.msra.mxu0 0.0
  %563 = vmatprep.subr.mxu0 0.0
  %564 = vmatpush1.msra.mxu0 0.0
  %565 = vmatprep.subr.mxu0 0.0
  %566 = vmatpush1.msra.mxu0 0.0
  %567 = vmatprep.subr.mxu0 0.0
  %568 = vmatpush1.msra.mxu0 0.0
  %569 = vmatprep.subr.mxu0 0.0
  %570 = vmatpush1.msra.mxu0 0.0
  %571 = vmatprep.subr.mxu0 0.0
  %572 = vmatpush1.msra.mxu0 0.0
  %573 = vmatprep.subr.mxu0 0.0
  %574 = vmatpush1.msra.mxu0 0.0
  %575 = vmatprep.subr.mxu0 0.0
  %576 = vmatpush1.msra.mxu0 0.0
  %577 = vmatprep.subr.mxu0 0.0
  %578 = vmatpush1.msra.mxu0 0.0
  %579 = vmatprep.subr.mxu0 0.0
  %580 = vmatpush1.msra.mxu0 0.0
  %581 = vmatprep.subr.mxu0 0.0
  %582 = vmatpush1.msra.mxu0 0.0
  %583 = vmatprep.subr.mxu0 0.0
  %584 = vmatpush1.msra.mxu0 0.0
  %585 = vmatprep.subr.mxu0 0.0
  %586 = vmatpush1.msra.mxu0 0.0
  %587 = vmatprep.subr.mxu0 0.0
  %588 = vmatpush1.msra.mxu0 0.0
  %589 = vmatprep.subr.mxu0 0.0
  %590 = vmatpush1.msra.mxu0 0.0
  %591 = vmatprep.subr.mxu0 0.0
  %592 = vmatpush1.msra.mxu0 0.0
  %593 = vmatprep.subr.mxu0 0.0
  %594 = vmatpush1.msra.mxu0 0.0
  %595 = vmatprep.subr.mxu0 0.0
  %596 = vmatpush1.msra.mxu0 0.0
  %597 = vmatprep.mubr.f32.mxu0 0.0
  %598 = vmatmul.mubr.f32.gmra.mrb[0].mxu0 %v531
  %v599 = vpop.f32.mrb[0].mxu0
  %v600 = vadd.f32 %v527, %v599
  %v601 = vpop.f32.mrb[0].mxu0
  %v602 = vadd.f32 %v527, %v601
  %603 = vdwg.mxu0
  %604 = vmatprep.subr.mxu0 %v521
  %605 = vmatpush1.msra.mxu0 %v520
  %606 = vmatprep.subr.mxu0 0.0
  %607 = vmatpush1.msra.mxu0 0.0
  %608 = vmatprep.subr.mxu0 0.0
  %609 = vmatpush1.msra.mxu0 0.0
  %610 = vmatprep.subr.mxu0 0.0
  %611 = vmatpush1.msra.mxu0 0.0
  %612 = vmatprep.subr.mxu0 0.0
  %613 = vmatpush1.msra.mxu0 0.0
  %614 = vmatprep.subr.mxu0 0.0
  %615 = vmatpush1.msra.mxu0 0.0
  %616 = vmatprep.subr.mxu0 0.0
  %617 = vmatpush1.msra.mxu0 0.0
  %618 = vmatprep.subr.mxu0 0.0
  %619 = vmatpush1.msra.mxu0 0.0
  %620 = vmatprep.subr.mxu0 0.0
  %621 = vmatpush1.msra.mxu0 0.0
  %622 = vmatprep.subr.mxu0 0.0
  %623 = vmatpush1.msra.mxu0 0.0
  %624 = vmatprep.subr.mxu0 0.0
  %625 = vmatpush1.msra.mxu0 0.0
  %626 = vmatprep.subr.mxu0 0.0
  %627 = vmatpush1.msra.mxu0 0.0
  %628 = vmatprep.subr.mxu0 0.0
  %629 = vmatpush1.msra.mxu0 0.0
  %630 = vmatprep.subr.mxu0 0.0
  %631 = vmatpush1.msra.mxu0 0.0
  %632 = vmatprep.subr.mxu0 0.0
  %633 = vmatpush1.msra.mxu0 0.0
  %634 = vmatprep.subr.mxu0 0.0
  %635 = vmatpush1.msra.mxu0 0.0
  %636 = vmatprep.subr.mxu0 0.0
  %637 = vmatpush1.msra.mxu0 0.0
  %638 = vmatprep.subr.mxu0 0.0
  %639 = vmatpush1.msra.mxu0 0.0
  %640 = vmatprep.subr.mxu0 0.0
  %641 = vmatpush1.msra.mxu0 0.0
  %642 = vmatprep.subr.mxu0 0.0
  %643 = vmatpush1.msra.mxu0 0.0
  %644 = vmatprep.subr.mxu0 0.0
  %645 = vmatpush1.msra.mxu0 0.0
  %646 = vmatprep.subr.mxu0 0.0
  %647 = vmatpush1.msra.mxu0 0.0
  %648 = vmatprep.subr.mxu0 0.0
  %649 = vmatpush1.msra.mxu0 0.0
  %650 = vmatprep.subr.mxu0 0.0
  %651 = vmatpush1.msra.mxu0 0.0
  %652 = vmatprep.subr.mxu0 0.0
  %653 = vmatpush1.msra.mxu0 0.0
  %654 = vmatprep.subr.mxu0 0.0
  %655 = vmatpush1.msra.mxu0 0.0
  %656 = vmatprep.subr.mxu0 0.0
  %657 = vmatpush1.msra.mxu0 0.0
  %658 = vmatprep.subr.mxu0 0.0
  %659 = vmatpush1.msra.mxu0 0.0
  %660 = vmatprep.subr.mxu0 0.0
  %661 = vmatpush1.msra.mxu0 0.0
  %662 = vmatprep.subr.mxu0 0.0
  %663 = vmatpush1.msra.mxu0 0.0
  %664 = vmatprep.subr.mxu0 0.0
  %665 = vmatpush1.msra.mxu0 0.0
  %666 = vmatprep.subr.mxu0 0.0
  %667 = vmatpush1.msra.mxu0 0.0
  %668 = vmatprep.mubr.f32.mxu0 0.0
  %669 = vmatmul.mubr.f32.gmra.mrb[0].mxu0 %v531
  %v670 = vpop.f32.mrb[0].mxu0
  %v671 = vadd.f32 %v527, %v670
  %v672 = vpop.f32.mrb[0].mxu0
  %v673 = vadd.f32 %v527, %v672
  %674 = vdwg.mxu0
  %v675 = vmax.f32 %v600, 0.0
  %v676 = vmax.f32 %v602, 0.0
  %v677 = vmax.f32 %v671, 0.0
  %v678 = vmax.f32 %v673, 0.0
  %679 = vst [vmem:[%s7] sm:$0xff] %v675
  %680 = vst [vmem:[%s7 + $0x8] sm:$0xff] %v676
  %681 = vst [vmem:[%s7 + $0x10] sm:$0xff] %v677
  %682 = vst [vmem:[%s7 + $0x18] sm:$0xff] %v678
  // Predicated region
  $region30: #{bottleneck_forward.1} parent=0 // pred_check
    _
  $region31: #{bottleneck_forward.1} parent=0 // pred_check_branch
    %684 = sbr.rel (0) target = $region33
  $region32: #{bottleneck_forward.1} parent=0 // pred_region
    _
  $region33: #{bottleneck_forward.1} parent=0 // pred_fallthru
    _
  // Predicated region
  $region34: #{bottleneck_forward.1} parent=0 // pred_check
    _
  $region35: #{bottleneck_forward.1} parent=0 // pred_check_branch
    %686 = sbr.rel (0) target = $region37
  $region36: #{bottleneck_forward.1} parent=0 // pred_region
    _
  $region37: #{bottleneck_forward.1} parent=0 // pred_fallthru
    _

</llo_original>
